<compile_context>
chip_gen: v5e
topology: v5e:2x2
jax: 0.10.0
libtpu: 0.0.40
codegen_flags: <defaults>
</compile_context>

<pallas_src>
import numpy as np
import jax
import jax.numpy as jnp
from jax.experimental import pallas as pl
from jax.experimental.pallas import tpu as pltpu


def _mlp_kernel(x_ref, w1_ref, b1_ref, w2_ref, b2_ref, o_ref):
    # x_ref:  (TB, H)  f32     w1_ref: (H, 256)  bf16   b1_ref: (1, 256) f32
    # w2_ref: (256, A) bf16    b2_ref: (1, A)    f32    o_ref:  (TB, A)  bf16
    # Cast activations to bf16 in-kernel (fused; no separate HBM pass).
    x = x_ref[...].astype(jnp.bfloat16)
    # Linear 1 (bf16 MXU, f32 accumulation) + bias + ReLU in f32
    h = jnp.dot(x, w1_ref[...], preferred_element_type=jnp.float32)
    h = jnp.maximum(h + b1_ref[...], 0.0)
    # Linear 2 + bias + Sigmoid (EUP) in f32; cast to output dtype on store
    y = jnp.dot(h.astype(jnp.bfloat16), w2_ref[...],
                preferred_element_type=jnp.float32)
    y = y + b2_ref[...]
    o_ref[...] = jax.nn.sigmoid(y).astype(o_ref.dtype)


def partition_net_pallas(features, w1, b1, w2, b2, *, block_b=1024,
                         out_dtype=jnp.bfloat16):
    """features: (B, H) f32/bf16; w1: (H, 256) bf16; w2: (256, A) bf16."""
    B, H = features.shape
    mid = w1.shape[1]
    A = w2.shape[1]

    # Batch tile (MXU M dimension).  No padding of the input array:
    #  * B <= block_b  -> single full-extent block (always layout-legal),
    #  * B  > block_b  -> multiple-of-8 tile; a ragged last block is handled
    #    by Pallas' partial-block masking (tail rows compute garbage that is
    #    never written back; there is no cross-row coupling in this MLP).
    if B <= block_b:
        tb = B
    else:
        tb = block_b
    n_blocks = pl.cdiv(B, tb)

    in_bytes = (B * H * features.dtype.itemsize
                + H * mid * w1.dtype.itemsize + mid * b1.dtype.itemsize
                + mid * A * w2.dtype.itemsize + A * b2.dtype.itemsize)
    out_bytes = B * A * np.dtype(out_dtype).itemsize
    cost = pl.CostEstimate(
        flops=2 * B * (H * mid + mid * A),
        transcendentals=B * A,                       # sigmoid
        bytes_accessed=in_bytes + out_bytes,
    )

    out = pl.pallas_call(
        _mlp_kernel,
        out_shape=jax.ShapeDtypeStruct((B, A), out_dtype),
        grid_spec=pltpu.PrefetchScalarGridSpec(
            num_scalar_prefetch=0,
            grid=(n_blocks,),
            in_specs=[
                # streamed per batch tile
                pl.BlockSpec((tb, H), lambda i: (i, 0)),
                # constant block index -> weights/biases stay VMEM-resident
                pl.BlockSpec((H, mid), lambda i: (0, 0)),
                pl.BlockSpec((1, mid), lambda i: (0, 0)),
                pl.BlockSpec((mid, A), lambda i: (0, 0)),
                pl.BlockSpec((1, A), lambda i: (0, 0)),
            ],
            out_specs=pl.BlockSpec((tb, A), lambda i: (i, 0)),
        ),
        compiler_params=pltpu.CompilerParams(
            dimension_semantics=("parallel",),   # batch tiles are independent
        ),
        cost_estimate=cost,
    )(features, w1, b1, w2, b2)
    return out


def create_partition_modes():
    """Replicates _create_partition_modes: 256 antennas -> 16 4x4 subarrays."""
    mode = jnp.zeros((256, 16), dtype=jnp.float32)
    rows = jnp.arange(256) // 16              # antenna row in 16x16 grid
    cols = jnp.arange(256) % 16               # antenna col in 16x16 grid
    sub_idx = (rows // 4) * 4 + (cols // 4)   # which of the 16 subarrays
    return mode.at[jnp.arange(256), sub_idx].set(1.0)


class SubarrayPartitionPallas:
    def __init__(self, num_antennas=256, hidden_dim=512, key=None,
                 block_b=1024):
        if key is None:
            key = jax.random.PRNGKey(42)
        k1, k2, k3, k4 = jax.random.split(key, 4)
        mid = 256
        bound1 = 1.0 / jnp.sqrt(hidden_dim)
        bound2 = 1.0 / jnp.sqrt(mid)
        # weights stored [in_dim, out_dim] in bf16 (MXU-native, half the DMA);
        # biases stay f32 for the f32 epilogue.
        self.w1 = jax.random.uniform(k1, (hidden_dim, mid), jnp.float32,
                                     -bound1, bound1).astype(jnp.bfloat16)
        self.b1 = jax.random.uniform(k2, (1, mid), jnp.float32, -bound1, bound1)
        self.w2 = jax.random.uniform(k3, (mid, num_antennas), jnp.float32,
                                     -bound2, bound2).astype(jnp.bfloat16)
        self.b2 = jax.random.uniform(k4, (1, num_antennas), jnp.float32,
                                     -bound2, bound2)
        self.partition_modes = create_partition_modes()
        self.block_b = block_b

    def __call__(self, features):
        partition_weights = partition_net_pallas(
            features, self.w1, self.b1, self.w2, self.b2, block_b=self.block_b
        )
        best_partition = self.partition_modes
        return partition_weights, best_partition


def _reference(features, mod):
    """Pure-JAX reference with the same bf16-matmul / f32-epilogue recipe."""
    x = features.astype(jnp.bfloat16)
    h = jnp.dot(x, mod.w1, preferred_element_type=jnp.float32) + mod.b1
    h = jnp.maximum(h, 0.0)
    y = jnp.dot(h.astype(jnp.bfloat16), mod.w2,
                preferred_element_type=jnp.float32) + mod.b2
    return jax.nn.sigmoid(y)


if __name__ == "__main__":
    key = jax.random.PRNGKey(0)
    batch, hidden_dim, num_antennas = 16, 512, 256
    features = jax.random.normal(key, (batch, hidden_dim), dtype=jnp.float32)

    # block_b=8 here just to exercise the multi-tile batch grid at small B;
    # production default is 1024 (amortizes the ~0.35 us per-step overhead).
    module = SubarrayPartitionPallas(num_antennas=num_antennas,
                                     hidden_dim=hidden_dim,
                                     key=jax.random.PRNGKey(42),
                                     block_b=8)

    partition_weights, best_partition = module(features)
    jax.block_until_ready(partition_weights)
    jax.block_until_ready(best_partition)

    # sanity checks against pure-JAX reference (bf16 output -> looser atol)
    ref = _reference(features, module)
    assert partition_weights.shape == (batch, num_antennas)
    assert partition_weights.dtype == jnp.bfloat16
    assert best_partition.shape == (256, 16)
    assert jnp.allclose(partition_weights.astype(jnp.float32), ref,
                        atol=1e-2, rtol=2e-2)
    assert jnp.allclose(best_partition.sum(), 256.0)

    print("KERNEL_OK")
</pallas_src>

<mosaic_0001>
module attributes {stable_mosaic.version = 11 : i64} {
  func.func @_mlp_kernel(%arg0: i32, %arg1: memref<8x512xf32, #tpu.memory_space<vmem>>, %arg2: memref<512x256xbf16, #tpu.memory_space<vmem>>, %arg3: memref<1x256xf32, #tpu.memory_space<vmem>>, %arg4: memref<256x256xbf16, #tpu.memory_space<vmem>>, %arg5: memref<1x256xf32, #tpu.memory_space<vmem>>, %arg6: memref<8x256xbf16, #tpu.memory_space<vmem>>) attributes {dimension_semantics = [#tpu.dimension_semantics<parallel>], iteration_bounds = array<i64: 2>, scalar_prefetch = 0 : i64, scratch_operands = 0 : i64, tpu.core_type = #tpu.core_type<tc>, window_params = [{transform_indices = @transform_0, window_bounds = array<i64: 8, 512>}, {pipeline_mode = #tpu.pipeline_mode<synchronous>, transform_indices = @transform_1, window_bounds = array<i64: 512, 256>}, {pipeline_mode = #tpu.pipeline_mode<synchronous>, transform_indices = @transform_2, window_bounds = array<i64: 1, 256>}, {pipeline_mode = #tpu.pipeline_mode<synchronous>, transform_indices = @transform_3, window_bounds = array<i64: 256, 256>}, {pipeline_mode = #tpu.pipeline_mode<synchronous>, transform_indices = @transform_4, window_bounds = array<i64: 1, 256>}, {transform_indices = @transform_5, window_bounds = array<i64: 8, 256>}]} {
    %c0 = arith.constant 0 : index
    %c0_0 = arith.constant 0 : index
    %0 = vector.load %arg1[%c0, %c0_0] : memref<8x512xf32, #tpu.memory_space<vmem>>, vector<8x512xf32>
    %1 = arith.truncf %0 : vector<8x512xf32> to vector<8x512xbf16>
    %c0_1 = arith.constant 0 : index
    %c0_2 = arith.constant 0 : index
    %2 = vector.load %arg2[%c0_1, %c0_2] : memref<512x256xbf16, #tpu.memory_space<vmem>>, vector<512x256xbf16>
    %cst = arith.constant dense<0.000000e+00> : vector<8x256xf32>
    %3 = tpu.matmul %1, %2, %cst {dimension_numbers = #tpu.dot_dimension_numbers<[1], [0], [0], [1], [0, 0, 1, 1], [], []>} : vector<8x512xbf16>, vector<512x256xbf16>, vector<8x256xf32> -> vector<8x256xf32>
    %c0_3 = arith.constant 0 : index
    %c0_4 = arith.constant 0 : index
    %4 = vector.load %arg3[%c0_3, %c0_4] : memref<1x256xf32, #tpu.memory_space<vmem>>, vector<1x256xf32>
    %5 = vector.broadcast %4 : vector<1x256xf32> to vector<8x256xf32>
    %6 = arith.addf %3, %5 : vector<8x256xf32>
    %cst_5 = arith.constant 0.000000e+00 : f32
    %7 = vector.broadcast %cst_5 : f32 to vector<8x256xf32>
    %8 = arith.maximumf %6, %7 : vector<8x256xf32>
    %9 = arith.truncf %8 : vector<8x256xf32> to vector<8x256xbf16>
    %c0_6 = arith.constant 0 : index
    %c0_7 = arith.constant 0 : index
    %10 = vector.load %arg4[%c0_6, %c0_7] : memref<256x256xbf16, #tpu.memory_space<vmem>>, vector<256x256xbf16>
    %cst_8 = arith.constant dense<0.000000e+00> : vector<8x256xf32>
    %11 = tpu.matmul %9, %10, %cst_8 {dimension_numbers = #tpu.dot_dimension_numbers<[1], [0], [0], [1], [0, 0, 1, 1], [], []>} : vector<8x256xbf16>, vector<256x256xbf16>, vector<8x256xf32> -> vector<8x256xf32>
    %c0_9 = arith.constant 0 : index
    %c0_10 = arith.constant 0 : index
    %12 = vector.load %arg5[%c0_9, %c0_10] : memref<1x256xf32, #tpu.memory_space<vmem>>, vector<1x256xf32>
    %13 = vector.broadcast %12 : vector<1x256xf32> to vector<8x256xf32>
    %14 = arith.addf %11, %13 : vector<8x256xf32>
    %15 = arith.negf %14 : vector<8x256xf32>
    %16 = math.exp %15 : vector<8x256xf32>
    %cst_11 = arith.constant 1.000000e+00 : f32
    %17 = vector.broadcast %cst_11 : f32 to vector<8x256xf32>
    %18 = arith.addf %17, %16 : vector<8x256xf32>
    %19 = arith.divf %17, %18 : vector<8x256xf32>
    %20 = arith.truncf %19 : vector<8x256xf32> to vector<8x256xbf16>
    %c0_12 = arith.constant 0 : index
    %c0_13 = arith.constant 0 : index
    %21 = vector.load %arg6[%c0_12, %c0_13] : memref<8x256xbf16, #tpu.memory_space<vmem>>, vector<8x256xbf16>
    tpu.vector_store %arg6[%c0_12, %c0_13], %20 {strides = array<i32>} : memref<8x256xbf16, #tpu.memory_space<vmem>>, vector<8x256xbf16>,
    return
  }
  func.func @transform_0(%arg0: i32) -> (i32, i32) {
    %c0_i32 = arith.constant 0 : i32
    %c0_i32_0 = arith.constant 0 : i32
    return %arg0, %c0_i32 : i32, i32
  }
  func.func @transform_1(%arg0: i32) -> (i32, i32) {
    %c0_i32 = arith.constant 0 : i32
    %c0_i32_0 = arith.constant 0 : i32
    %c0_i32_1 = arith.constant 0 : i32
    return %c0_i32, %c0_i32_0 : i32, i32
  }
  func.func @transform_2(%arg0: i32) -> (i32, i32) {
    %c0_i32 = arith.constant 0 : i32
    %c0_i32_0 = arith.constant 0 : i32
    %c0_i32_1 = arith.constant 0 : i32
    return %c0_i32, %c0_i32_0 : i32, i32
  }
  func.func @transform_3(%arg0: i32) -> (i32, i32) {
    %c0_i32 = arith.constant 0 : i32
    %c0_i32_0 = arith.constant 0 : i32
    %c0_i32_1 = arith.constant 0 : i32
    return %c0_i32, %c0_i32_0 : i32, i32
  }
  func.func @transform_4(%arg0: i32) -> (i32, i32) {
    %c0_i32 = arith.constant 0 : i32
    %c0_i32_0 = arith.constant 0 : i32
    %c0_i32_1 = arith.constant 0 : i32
    return %c0_i32, %c0_i32_0 : i32, i32
  }
  func.func @transform_5(%arg0: i32) -> (i32, i32) {
    %c0_i32 = arith.constant 0 : i32
    %c0_i32_0 = arith.constant 0 : i32
    return %arg0, %c0_i32 : i32, i32
  }
}

</mosaic_0001>

<llo_original>
// kernel: tpu_custom_call.1
$region0: #{tpu_custom_call.1}
  #allocation0 [shape = 'u32[]', space=smem, size = 0x4, offset = 0x4, fixed_abs, tag = 'smem constant byte address 0x4 - core index']
  #allocation1 [shape = 'u32[72,128]{1,0:T(1,128)}', space=vmem, size = 0x9000, scoped, tag = 'internal scratch']
  %s0 = inlined_call_operand.hbm [shape: f32[16,512], index: 0, kind: input, shape index: {}]
  %s1 = inlined_call_operand.hbm [shape: bf16[512,256], index: 1, kind: input, shape index: {}]
  %s2 = inlined_call_operand.hbm [shape: f32[1,256], index: 2, kind: input, shape index: {}]
  %s3 = inlined_call_operand.hbm [shape: bf16[256,256], index: 3, kind: input, shape index: {}]
  %s4 = inlined_call_operand.vmem [shape: f32[1,256], index: 4, kind: input, shape index: {}]
  %s5 = inlined_call_operand.hbm [shape: bf16[16,256], index: 5, kind: output, shape index: {}]
  %s6 = sld [smem:[#allocation0]]
  $region69: #{tpu_custom_call.1} parent=0
    _
  %s8 = ssub.s32 1, %s6
  %s9 = scalar_select 0, %s8, %s6
  $region1: #{tpu_custom_call.1} parent=0
    #allocation2 [shape = 'u8[32768]{0}', space=vmem, size = 0x8000, scoped, tag = 'input window, operand 0']
    #allocation3 [shape = 's32[2]{0}', space=sflag, size = 0x8, scoped, tag = 'scoped memory for tpu_custom_call.1']
    #allocation4 [shape = 's32[2]{0}', space=sflag, size = 0x8, scoped, tag = 'scoped memory for tpu_custom_call.1']
    #allocation5 [shape = 'u8[262144]{0}', space=vmem, size = 0x40000, scoped, tag = 'input window, operand 1, single buffered']
    #allocation6 [shape = 's32[1]{0}', space=sflag, size = 0x4, scoped, tag = 'scoped memory for tpu_custom_call.1']
    #allocation7 [shape = 'u8[1024]{0}', space=vmem, size = 0x400, scoped, tag = 'input window, operand 2, single buffered']
    #allocation8 [shape = 'u8[131072]{0}', space=vmem, size = 0x20000, scoped, tag = 'input window, operand 3, single buffered']
    #allocation9 [shape = 's32[1]{0}', space=sflag, size = 0x4, scoped, tag = 'scoped memory for tpu_custom_call.1']
    #allocation10 [shape = 'u8[8192]{0}', space=vmem, size = 0x2000, scoped, tag = 'output window, operand 0']
    %10 = vsyncpa [#allocation3], 0
    %s11 = scalar_lea.sflag [#allocation3], 1
    %12 = vsyncpa %s11, 0
    %13 = vsyncpa [#allocation6], 0
    %14 = vsyncpa [#allocation9], 0
    %15 = vsyncpa [#allocation4], 0
    %s16 = scalar_lea.sflag [#allocation4], 1
    %17 = vsyncpa %s16, 0
    loop: start=0, step=1, limit=4
    $region2: #{tpu_custom_call.1} parent=1 // loop_pre_header
      _
    $region3: #{tpu_custom_call.1} parent=1 // loop_header
      %s19 = sphi 0, %s23
      %p20 = scmp.ge.s32.totalorder %s19, 4
      %s29 = sphi 0, %s31
      %s32 = sphi 0, %s29
      %s33 = sphi 0, %s32
      %s49 = sphi 0, %s33
      %s53 = sphi 0, %s53
      %s55 = sphi 0, %s53
      %s56 = sphi 0, %s55
      %s70 = sphi 0, %s56
      %s74 = sphi 0, %s74
      %s76 = sphi 0, %s74
      %s77 = sphi 0, %s76
      %s91 = sphi 0, %s77
      %s95 = sphi 0, %s95
      %s97 = sphi 0, %s95
      %s98 = sphi 0, %s97
      %s112 = sphi 0, %s98
      %s116 = sphi 0, %s116
      %s118 = sphi 0, %s116
      %s119 = sphi 0, %s118
      %s133 = sphi 0, %s119
      %s139 = sphi 0, %s141
      %s142 = sphi 0, %s139
      %s143 = sphi 0, %s142
      %s159 = sphi 0, %s143
    $region4: #{tpu_custom_call.1} parent=1 // loop_header_branch
      %22 = sbr.rel (%p20) target = $region8
    $region5: #{tpu_custom_call.1} parent=1 // loop_body
      %s24 = ssub.s32 %s19, 1
      %s25 = ssub.s32 %s19, 2
      %s26 = sadd.s32 %s19, 1
      %s27 = ssub.s32 %s19, %s26
      %p28 = scmp.eq.s32.totalorder %s27, 0
      %s30 = sadd.s32 %s29, 1
      %s31 = scalar_select %p28, %s29, %s30
      %p34 = pneg %p28
      %p35 = scmp.eq.s32.totalorder %s19, 1
      %p36 = por %p34, %p35
      %p37 = scmp.ne.s32.totalorder %s29, %s32
      %p38 = scmp.eq.s32.totalorder %s19, 0
      %p39 = por %p37, %p38
      %p40 = scmp.ne.s32.totalorder %s29, %s32
      %p41 = scmp.eq.s32.totalorder %s24, 1
      %p42 = por %p40, %p41
      %p43 = scmp.ne.s32.totalorder %s32, %s33
      %p44 = scmp.eq.s32.totalorder %s24, 0
      %p45 = por %p43, %p44
      %p46 = scmp.ne.s32.totalorder %s32, %s33
      %p47 = scmp.eq.s32.totalorder %s25, 1
      %p48 = por %p46, %p47
      %p50 = scmp.ne.s32.totalorder %s33, %s49
      %p51 = scmp.eq.s32.totalorder %s25, 0
      %p52 = por %p50, %p51
      %s54 = sadd.s32 %s53, 1
      %p57 = scmp.eq.s32.totalorder %s19, 1
      %p58 = scmp.ne.s32.totalorder %s53, %s55
      %p59 = scmp.eq.s32.totalorder %s19, 0
      %p60 = por %p58, %p59
      %p61 = scmp.ne.s32.totalorder %s53, %s55
      %p62 = scmp.eq.s32.totalorder %s24, 1
      %p63 = por %p61, %p62
      %p64 = scmp.ne.s32.totalorder %s55, %s56
      %p65 = scmp.eq.s32.totalorder %s24, 0
      %p66 = por %p64, %p65
      %p67 = scmp.ne.s32.totalorder %s55, %s56
      %p68 = scmp.eq.s32.totalorder %s25, 1
      %p69 = por %p67, %p68
      %p71 = scmp.ne.s32.totalorder %s56, %s70
      %p72 = scmp.eq.s32.totalorder %s25, 0
      %p73 = por %p71, %p72
      %s75 = sadd.s32 %s74, 1
      %p78 = scmp.eq.s32.totalorder %s19, 1
      %p79 = scmp.ne.s32.totalorder %s74, %s76
      %p80 = scmp.eq.s32.totalorder %s19, 0
      %p81 = por %p79, %p80
      %p82 = scmp.ne.s32.totalorder %s74, %s76
      %p83 = scmp.eq.s32.totalorder %s24, 1
      %p84 = por %p82, %p83
      %p85 = scmp.ne.s32.totalorder %s76, %s77
      %p86 = scmp.eq.s32.totalorder %s24, 0
      %p87 = por %p85, %p86
      %p88 = scmp.ne.s32.totalorder %s76, %s77
      %p89 = scmp.eq.s32.totalorder %s25, 1
      %p90 = por %p88, %p89
      %p92 = scmp.ne.s32.totalorder %s77, %s91
      %p93 = scmp.eq.s32.totalorder %s25, 0
      %p94 = por %p92, %p93
      %s96 = sadd.s32 %s95, 1
      %p99 = scmp.eq.s32.totalorder %s19, 1
      %p100 = scmp.ne.s32.totalorder %s95, %s97
      %p101 = scmp.eq.s32.totalorder %s19, 0
      %p102 = por %p100, %p101
      %p103 = scmp.ne.s32.totalorder %s95, %s97
      %p104 = scmp.eq.s32.totalorder %s24, 1
      %p105 = por %p103, %p104
      %p106 = scmp.ne.s32.totalorder %s97, %s98
      %p107 = scmp.eq.s32.totalorder %s24, 0
      %p108 = por %p106, %p107
      %p109 = scmp.ne.s32.totalorder %s97, %s98
      %p110 = scmp.eq.s32.totalorder %s25, 1
      %p111 = por %p109, %p110
      %p113 = scmp.ne.s32.totalorder %s98, %s112
      %p114 = scmp.eq.s32.totalorder %s25, 0
      %p115 = por %p113, %p114
      %s117 = sadd.s32 %s116, 1
      %p120 = scmp.eq.s32.totalorder %s19, 1
      %p121 = scmp.ne.s32.totalorder %s116, %s118
      %p122 = scmp.eq.s32.totalorder %s19, 0
      %p123 = por %p121, %p122
      %p124 = scmp.ne.s32.totalorder %s116, %s118
      %p125 = scmp.eq.s32.totalorder %s24, 1
      %p126 = por %p124, %p125
      %p127 = scmp.ne.s32.totalorder %s118, %s119
      %p128 = scmp.eq.s32.totalorder %s24, 0
      %p129 = por %p127, %p128
      %p130 = scmp.ne.s32.totalorder %s118, %s119
      %p131 = scmp.eq.s32.totalorder %s25, 1
      %p132 = por %p130, %p131
      %p134 = scmp.ne.s32.totalorder %s119, %s133
      %p135 = scmp.eq.s32.totalorder %s25, 0
      %p136 = por %p134, %p135
      %s137 = ssub.s32 %s19, %s26
      %p138 = scmp.eq.s32.totalorder %s137, 0
      %s140 = sadd.s32 %s139, 1
      %s141 = scalar_select %p138, %s139, %s140
      %p144 = pneg %p138
      %p145 = scmp.eq.s32.totalorder %s19, 1
      %p146 = por %p144, %p145
      %p147 = scmp.ne.s32.totalorder %s139, %s142
      %p148 = scmp.eq.s32.totalorder %s19, 0
      %p149 = por %p147, %p148
      %p150 = scmp.ne.s32.totalorder %s139, %s142
      %p151 = scmp.eq.s32.totalorder %s24, 1
      %p152 = por %p150, %p151
      %p153 = scmp.ne.s32.totalorder %s142, %s143
      %p154 = scmp.eq.s32.totalorder %s24, 0
      %p155 = por %p153, %p154
      %p156 = scmp.ne.s32.totalorder %s142, %s143
      %p157 = scmp.eq.s32.totalorder %s25, 1
      %p158 = por %p156, %p157
      %p160 = scmp.ne.s32.totalorder %s143, %s159
      %p161 = scmp.eq.s32.totalorder %s25, 0
      %p162 = por %p160, %p161
      %p163 = scmp.le.s32.totalorder 1, %s19
      %p164 = scmp.lt.s32.totalorder %s19, 3
      %p165 = pnand %p163, %p164
      %p166 = pneg %p165
      // Predicated region
      $region9: #{tpu_custom_call.1} parent=5 // pred_check
        _
      $region10: #{tpu_custom_call.1} parent=5 // pred_check_branch
        %168 = sbr.rel (%p165) target = $region12
      $region11: #{tpu_custom_call.1} parent=5 // pred_region
        %s169 = ssub.s32 %s19, 1
        // Predicated region
        $region13: #{tpu_custom_call.1} parent=11 // pred_check
          %p170 = pneg %p66
        $region14: #{tpu_custom_call.1} parent=11 // pred_check_branch
          %172 = sbr.rel (%p170) target = $region16
        $region15: #{tpu_custom_call.1} parent=11 // pred_region
          %174 = vsyncadd [#allocation6], 0
          %s175 = sshll.u32 %s1, 4
          %s176 = int_to_ptr.hbm [resolvable:$true] %s175
          %s177 = sshll.u32 [#allocation5], 4
          %s178 = int_to_ptr.vmem [resolvable:$true] %s177
          %183 = dma.hbm_to_vmem [thread:$0]  %s176, 8192, %s178, [#allocation6], 128, 128, 8
        $region16: #{tpu_custom_call.1} parent=11 // pred_fallthru
          _
        // Predicated region
        $region17: #{tpu_custom_call.1} parent=11 // pred_check
          %p184 = pneg %p87
        $region18: #{tpu_custom_call.1} parent=11 // pred_check_branch
          %186 = sbr.rel (%p184) target = $region20
        $region19: #{tpu_custom_call.1} parent=11 // pred_region
          %188 = vsyncadd [#allocation6], 0
          %s190 = sshll.u32 %s2, 4
          %s191 = int_to_ptr.hbm [resolvable:$true] %s190
          %s192 = sshll.u32 [#allocation7], 4
          %s193 = int_to_ptr.vmem [resolvable:$true] %s192
          %195 = dma.hbm_to_vmem [thread:$0]  %s191, 32, %s193, [#allocation6]
        $region20: #{tpu_custom_call.1} parent=11 // pred_fallthru
          _
        // Predicated region
        $region21: #{tpu_custom_call.1} parent=11 // pred_check
          %p196 = pneg %p108
        $region22: #{tpu_custom_call.1} parent=11 // pred_check_branch
          %198 = sbr.rel (%p196) target = $region24
        $region23: #{tpu_custom_call.1} parent=11 // pred_region
          %200 = vsyncadd [#allocation9], 0
          %s201 = sshll.u32 %s3, 4
          %s202 = int_to_ptr.hbm [resolvable:$true] %s201
          %s203 = sshll.u32 [#allocation8], 4
          %s204 = int_to_ptr.vmem [resolvable:$true] %s203
          %209 = dma.hbm_to_vmem [thread:$0]  %s202, 4096, %s204, [#allocation9], 128, 128, 8
        $region24: #{tpu_custom_call.1} parent=11 // pred_fallthru
          _
        // Predicated region
        $region25: #{tpu_custom_call.1} parent=11 // pred_check
          %p210 = pneg %p129
        $region26: #{tpu_custom_call.1} parent=11 // pred_check_branch
          %212 = sbr.rel (%p210) target = $region28
        $region27: #{tpu_custom_call.1} parent=11 // pred_region
          _
        $region28: #{tpu_custom_call.1} parent=11 // pred_fallthru
          _
      $region12: #{tpu_custom_call.1} parent=5 // pred_fallthru
        _
      %p213 = scmp.lt.s32.totalorder %s19, 2
      // Predicated region
      $region29: #{tpu_custom_call.1} parent=5 // pred_check
        %p214 = pneg %p213
      $region30: #{tpu_custom_call.1} parent=5 // pred_check_branch
        %216 = sbr.rel (%p214) target = $region32
      $region31: #{tpu_custom_call.1} parent=5 // pred_region
        // Predicated region
        $region33: #{tpu_custom_call.1} parent=31 // pred_check
          %p217 = pneg %p39
        $region34: #{tpu_custom_call.1} parent=31 // pred_check_branch
          %219 = sbr.rel (%p217) target = $region36
        $region35: #{tpu_custom_call.1} parent=31 // pred_region
          %s220 = sand.u32 %s29, 1
          %s221 = scalar_lea.sflag [#allocation3], %s220
          %s222 = sand.u32 %s29, 1
          %s223 = smul.addr %s222, 32
          %s224 = scalar_lea.vmem [#allocation2], %s223
          %226 = vsyncadd %s221, 0
          %s227 = smul.addr %s19, 4
          %s228 = smul.addr %s227, 8
          %s229 = scalar_lea.hbm %s0, %s228
          %s231 = sshll.u32 %s229, 4
          %s232 = int_to_ptr.hbm [resolvable:$true] %s231
          %s233 = sshll.u32 %s224, 4
          %s234 = int_to_ptr.vmem [resolvable:$true] %s233
          %236 = dma.hbm_to_vmem [thread:$0]  %s232, 512, %s234, %s221
        $region36: #{tpu_custom_call.1} parent=31 // pred_fallthru
          _
      $region32: #{tpu_custom_call.1} parent=5 // pred_fallthru
        _
      %p237 = scmp.le.s32.totalorder 1, %s19
      %p238 = scmp.lt.s32.totalorder %s19, 3
      %p239 = pnand %p237, %p238
      %p240 = pneg %p239
      // Predicated region
      $region37: #{tpu_custom_call.1} parent=5 // pred_check
        _
      $region38: #{tpu_custom_call.1} parent=5 // pred_check_branch
        %242 = sbr.rel (%p239) target = $region40
      $region39: #{tpu_custom_call.1} parent=5 // pred_region
        %s243 = ssub.s32 %s19, 1
        %s244 = sand.u32 %s32, 1
        %s245 = scalar_lea.sflag [#allocation3], %s244
        %s246 = sand.u32 %s32, 1
        %s247 = smul.addr %s246, 32
        %s248 = scalar_lea.vmem [#allocation2], %s247
        // Predicated region
        $region41: #{tpu_custom_call.1} parent=39 // pred_check
          %p249 = pneg %p45
        $region42: #{tpu_custom_call.1} parent=39 // pred_check_branch
          %251 = sbr.rel (%p249) target = $region44
        $region43: #{tpu_custom_call.1} parent=39 // pred_region
          %253 = dma.done %s245, 512
        $region44: #{tpu_custom_call.1} parent=39 // pred_fallthru
          _
        // Predicated region
        $region45: #{tpu_custom_call.1} parent=39 // pred_check
          %p254 = pneg %p66
        $region46: #{tpu_custom_call.1} parent=39 // pred_check_branch
          %256 = sbr.rel (%p254) target = $region48
        $region47: #{tpu_custom_call.1} parent=39 // pred_region
          %258 = dma.done [#allocation6], 8192
        $region48: #{tpu_custom_call.1} parent=39 // pred_fallthru
          _
        // Predicated region
        $region49: #{tpu_custom_call.1} parent=39 // pred_check
          %p259 = pneg %p87
        $region50: #{tpu_custom_call.1} parent=39 // pred_check_branch
          %261 = sbr.rel (%p259) target = $region52
        $region51: #{tpu_custom_call.1} parent=39 // pred_region
          %263 = dma.done [#allocation6], 32
        $region52: #{tpu_custom_call.1} parent=39 // pred_fallthru
          _
        // Predicated region
        $region53: #{tpu_custom_call.1} parent=39 // pred_check
          %p264 = pneg %p108
        $region54: #{tpu_custom_call.1} parent=39 // pred_check_branch
          %266 = sbr.rel (%p264) target = $region56
        $region55: #{tpu_custom_call.1} parent=39 // pred_region
          %268 = dma.done [#allocation9], 4096
        $region56: #{tpu_custom_call.1} parent=39 // pred_fallthru
          _
        %s269 = sand.u32 %s32, 1
        %s270 = scalar_lea.sflag [#allocation3], %s269
        %s271 = sand.u32 %s32, 1
        %s272 = smul.addr %s271, 32
        %s273 = scalar_lea.vmem [#allocation2], %s272
        %p274 = pneg %p45
        %p275 = pneg %p42
        %p276 = pneg %p66
        %p277 = pneg %p63
        %p278 = pneg %p87
        %p279 = pneg %p84
        %p280 = pneg %p108
        %p281 = pneg %p105
        %p282 = pneg %p129
        %p283 = pneg %p126
        %p284 = pneg %p155
        %p285 = pneg %p152
        %s286 = sand.u32 %s142, 1
        %s287 = scalar_lea.sflag [#allocation4], %s286
        %s288 = sand.u32 %s142, 1
        %s289 = smul.addr %s288, 8
        %s290 = scalar_lea.vmem [#allocation10], %s289
        %v291 = vld [vmem:[%s248] sm:$0xff]
        %v292 = vld [vmem:[%s248 + $0x8] sm:$0xff]
        %v293 = vld [vmem:[%s248 + $0x10] sm:$0xff]
        %v294 = vld [vmem:[%s248 + $0x18] sm:$0xff]
        %v295 = vpack.c.bf16 %v291, %v291
        %v296 = vpack.c.bf16 %v292, %v292
        %v297 = vpack.c.bf16 %v293, %v293
        %v298 = vpack.c.bf16 %v294, %v294
        %v299 = vld [vmem:[#allocation5] sm:$0xff]
        %v300 = vld [vmem:[#allocation5 + $0x8] sm:$0xff]
        %v301 = vld [vmem:[#allocation5 + $0x10] sm:$0xff]
        %v302 = vld [vmem:[#allocation5 + $0x18] sm:$0xff]
        %v303 = vld [vmem:[#allocation5 + $0x20] sm:$0xff]
        %v304 = vld [vmem:[#allocation5 + $0x28] sm:$0xff]
        %v305 = vld [vmem:[#allocation5 + $0x30] sm:$0xff]
        %v306 = vld [vmem:[#allocation5 + $0x38] sm:$0xff]
        %v307 = vld [vmem:[#allocation5 + $0x40] sm:$0xff]
        %v308 = vld [vmem:[#allocation5 + $0x48] sm:$0xff]
        %v309 = vld [vmem:[#allocation5 + $0x50] sm:$0xff]
        %v310 = vld [vmem:[#allocation5 + $0x58] sm:$0xff]
        %v311 = vld [vmem:[#allocation5 + $0x60] sm:$0xff]
        %v312 = vld [vmem:[#allocation5 + $0x68] sm:$0xff]
        %v313 = vld [vmem:[#allocation5 + $0x70] sm:$0xff]
        %v314 = vld [vmem:[#allocation5 + $0x78] sm:$0xff]
        %v315 = vld [vmem:[#allocation5 + $0x80] sm:$0xff]
        %v316 = vld [vmem:[#allocation5 + $0x88] sm:$0xff]
        %v317 = vld [vmem:[#allocation5 + $0x90] sm:$0xff]
        %v318 = vld [vmem:[#allocation5 + $0x98] sm:$0xff]
        %v319 = vld [vmem:[#allocation5 + $0xa0] sm:$0xff]
        %v320 = vld [vmem:[#allocation5 + $0xa8] sm:$0xff]
        %v321 = vld [vmem:[#allocation5 + $0xb0] sm:$0xff]
        %v322 = vld [vmem:[#allocation5 + $0xb8] sm:$0xff]
        %v323 = vld [vmem:[#allocation5 + $0xc0] sm:$0xff]
        %v324 = vld [vmem:[#allocation5 + $0xc8] sm:$0xff]
        %v325 = vld [vmem:[#allocation5 + $0xd0] sm:$0xff]
        %v326 = vld [vmem:[#allocation5 + $0xd8] sm:$0xff]
        %v327 = vld [vmem:[#allocation5 + $0xe0] sm:$0xff]
        %v328 = vld [vmem:[#allocation5 + $0xe8] sm:$0xff]
        %v329 = vld [vmem:[#allocation5 + $0xf0] sm:$0xff]
        %v330 = vld [vmem:[#allocation5 + $0xf8] sm:$0xff]
        %v331 = vld [vmem:[#allocation5 + $0x100] sm:$0xff]
        %v332 = vld [vmem:[#allocation5 + $0x108] sm:$0xff]
        %v333 = vld [vmem:[#allocation5 + $0x110] sm:$0xff]
        %v334 = vld [vmem:[#allocation5 + $0x118] sm:$0xff]
        %v335 = vld [vmem:[#allocation5 + $0x120] sm:$0xff]
        %v336 = vld [vmem:[#allocation5 + $0x128] sm:$0xff]
        %v337 = vld [vmem:[#allocation5 + $0x130] sm:$0xff]
        %v338 = vld [vmem:[#allocation5 + $0x138] sm:$0xff]
        %v339 = vld [vmem:[#allocation5 + $0x140] sm:$0xff]
        %v340 = vld [vmem:[#allocation5 + $0x148] sm:$0xff]
        %v341 = vld [vmem:[#allocation5 + $0x150] sm:$0xff]
        %v342 = vld [vmem:[#allocation5 + $0x158] sm:$0xff]
        %v343 = vld [vmem:[#allocation5 + $0x160] sm:$0xff]
        %v344 = vld [vmem:[#allocation5 + $0x168] sm:$0xff]
        %v345 = vld [vmem:[#allocation5 + $0x170] sm:$0xff]
        %v346 = vld [vmem:[#allocation5 + $0x178] sm:$0xff]
        %v347 = vld [vmem:[#allocation5 + $0x180] sm:$0xff]
        %v348 = vld [vmem:[#allocation5 + $0x188] sm:$0xff]
        %v349 = vld [vmem:[#allocation5 + $0x190] sm:$0xff]
        %v350 = vld [vmem:[#allocation5 + $0x198] sm:$0xff]
        %v351 = vld [vmem:[#allocation5 + $0x1a0] sm:$0xff]
        %v352 = vld [vmem:[#allocation5 + $0x1a8] sm:$0xff]
        %v353 = vld [vmem:[#allocation5 + $0x1b0] sm:$0xff]
        %v354 = vld [vmem:[#allocation5 + $0x1b8] sm:$0xff]
        %v355 = vld [vmem:[#allocation5 + $0x1c0] sm:$0xff]
        %v356 = vld [vmem:[#allocation5 + $0x1c8] sm:$0xff]
        %v357 = vld [vmem:[#allocation5 + $0x1d0] sm:$0xff]
        %v358 = vld [vmem:[#allocation5 + $0x1d8] sm:$0xff]
        %v359 = vld [vmem:[#allocation5 + $0x1e0] sm:$0xff]
        %v360 = vld [vmem:[#allocation5 + $0x1e8] sm:$0xff]
        %v361 = vld [vmem:[#allocation5 + $0x1f0] sm:$0xff]
        %v362 = vld [vmem:[#allocation5 + $0x1f8] sm:$0xff]
        %v363 = vld [vmem:[#allocation7] sm:$0x3]
        %v365 = vperm.slane %v363, 0
        %v366 = vperm.slane %v363, 1
        %v433 = vunpack.c.l.b16 %v299
        %v434 = vunpack.c.h.b16 %v299
        %v435 = vunpack.c.l.b16 %v300
        %v436 = vunpack.c.h.b16 %v300
        %v437 = vunpack.c.l.b16 %v301
        %v438 = vunpack.c.h.b16 %v301
        %v439 = vunpack.c.l.b16 %v302
        %v440 = vunpack.c.h.b16 %v302
        %v441 = vunpack.c.l.b16 %v303
        %v442 = vunpack.c.h.b16 %v303
        %v443 = vunpack.c.l.b16 %v304
        %v444 = vunpack.c.h.b16 %v304
        %v445 = vunpack.c.l.b16 %v305
        %v446 = vunpack.c.h.b16 %v305
        %v447 = vunpack.c.l.b16 %v306
        %v448 = vunpack.c.h.b16 %v306
        %v449 = vunpack.c.l.b16 %v307
        %v450 = vunpack.c.h.b16 %v307
        %v451 = vunpack.c.l.b16 %v308
        %v452 = vunpack.c.h.b16 %v308
        %v453 = vunpack.c.l.b16 %v309
        %v454 = vunpack.c.h.b16 %v309
        %v455 = vunpack.c.l.b16 %v310
        %v456 = vunpack.c.h.b16 %v310
        %v457 = vunpack.c.l.b16 %v311
        %v458 = vunpack.c.h.b16 %v311
        %v459 = vunpack.c.l.b16 %v312
        %v460 = vunpack.c.h.b16 %v312
        %v461 = vunpack.c.l.b16 %v313
        %v462 = vunpack.c.h.b16 %v313
        %v463 = vunpack.c.l.b16 %v314
        %v464 = vunpack.c.h.b16 %v314
        %v465 = vunpack.c.l.b16 %v315
        %v466 = vunpack.c.h.b16 %v315
        %v467 = vunpack.c.l.b16 %v316
        %v468 = vunpack.c.h.b16 %v316
        %v469 = vunpack.c.l.b16 %v317
        %v470 = vunpack.c.h.b16 %v317
        %v471 = vunpack.c.l.b16 %v318
        %v472 = vunpack.c.h.b16 %v318
        %v473 = vunpack.c.l.b16 %v319
        %v474 = vunpack.c.h.b16 %v319
        %v475 = vunpack.c.l.b16 %v320
        %v476 = vunpack.c.h.b16 %v320
        %v477 = vunpack.c.l.b16 %v321
        %v478 = vunpack.c.h.b16 %v321
        %v479 = vunpack.c.l.b16 %v322
        %v480 = vunpack.c.h.b16 %v322
        %v481 = vunpack.c.l.b16 %v323
        %v482 = vunpack.c.h.b16 %v323
        %v483 = vunpack.c.l.b16 %v324
        %v484 = vunpack.c.h.b16 %v324
        %v485 = vunpack.c.l.b16 %v325
        %v486 = vunpack.c.h.b16 %v325
        %v487 = vunpack.c.l.b16 %v326
        %v488 = vunpack.c.h.b16 %v326
        %v489 = vunpack.c.l.b16 %v327
        %v490 = vunpack.c.h.b16 %v327
        %v491 = vunpack.c.l.b16 %v328
        %v492 = vunpack.c.h.b16 %v328
        %v493 = vunpack.c.l.b16 %v329
        %v494 = vunpack.c.h.b16 %v329
        %v495 = vunpack.c.l.b16 %v330
        %v496 = vunpack.c.h.b16 %v330
        %v497 = vunpack.c.l.b16 %v331
        %v498 = vunpack.c.h.b16 %v331
        %v499 = vunpack.c.l.b16 %v332
        %v500 = vunpack.c.h.b16 %v332
        %v501 = vunpack.c.l.b16 %v333
        %v502 = vunpack.c.h.b16 %v333
        %v503 = vunpack.c.l.b16 %v334
        %v504 = vunpack.c.h.b16 %v334
        %v505 = vunpack.c.l.b16 %v335
        %v506 = vunpack.c.h.b16 %v335
        %v507 = vunpack.c.l.b16 %v336
        %v508 = vunpack.c.h.b16 %v336
        %v509 = vunpack.c.l.b16 %v337
        %v510 = vunpack.c.h.b16 %v337
        %v511 = vunpack.c.l.b16 %v338
        %v512 = vunpack.c.h.b16 %v338
        %v513 = vunpack.c.l.b16 %v339
        %v514 = vunpack.c.h.b16 %v339
        %v515 = vunpack.c.l.b16 %v340
        %v516 = vunpack.c.h.b16 %v340
        %v517 = vunpack.c.l.b16 %v341
        %v518 = vunpack.c.h.b16 %v341
        %v519 = vunpack.c.l.b16 %v342
        %v520 = vunpack.c.h.b16 %v342
        %v521 = vunpack.c.l.b16 %v343
        %v522 = vunpack.c.h.b16 %v343
        %v523 = vunpack.c.l.b16 %v344
        %v524 = vunpack.c.h.b16 %v344
        %v525 = vunpack.c.l.b16 %v345
        %v526 = vunpack.c.h.b16 %v345
        %v527 = vunpack.c.l.b16 %v346
        %v528 = vunpack.c.h.b16 %v346
        %v529 = vunpack.c.l.b16 %v347
        %v530 = vunpack.c.h.b16 %v347
        %v531 = vunpack.c.l.b16 %v348
        %v532 = vunpack.c.h.b16 %v348
        %v533 = vunpack.c.l.b16 %v349
        %v534 = vunpack.c.h.b16 %v349
        %v535 = vunpack.c.l.b16 %v350
        %v536 = vunpack.c.h.b16 %v350
        %v537 = vunpack.c.l.b16 %v351
        %v538 = vunpack.c.h.b16 %v351
        %v539 = vunpack.c.l.b16 %v352
        %v540 = vunpack.c.h.b16 %v352
        %v541 = vunpack.c.l.b16 %v353
        %v542 = vunpack.c.h.b16 %v353
        %v543 = vunpack.c.l.b16 %v354
        %v544 = vunpack.c.h.b16 %v354
        %v545 = vunpack.c.l.b16 %v355
        %v546 = vunpack.c.h.b16 %v355
        %v547 = vunpack.c.l.b16 %v356
        %v548 = vunpack.c.h.b16 %v356
        %v549 = vunpack.c.l.b16 %v357
        %v550 = vunpack.c.h.b16 %v357
        %v551 = vunpack.c.l.b16 %v358
        %v552 = vunpack.c.h.b16 %v358
        %v553 = vunpack.c.l.b16 %v359
        %v554 = vunpack.c.h.b16 %v359
        %v555 = vunpack.c.l.b16 %v360
        %v556 = vunpack.c.h.b16 %v360
        %v557 = vunpack.c.l.b16 %v361
        %v558 = vunpack.c.h.b16 %v361
        %v559 = vunpack.c.l.b16 %v362
        %v560 = vunpack.c.h.b16 %v362
        %v561 = vpack.c.b16 %v435, %v433
        %v562 = vpack.c.b16 %v436, %v434
        %v563 = vpack.c.b16 %v439, %v437
        %v564 = vpack.c.b16 %v440, %v438
        %v565 = vpack.c.b16 %v443, %v441
        %v566 = vpack.c.b16 %v444, %v442
        %v567 = vpack.c.b16 %v447, %v445
        %v568 = vpack.c.b16 %v448, %v446
        %v569 = vpack.c.b16 %v451, %v449
        %v570 = vpack.c.b16 %v452, %v450
        %v571 = vpack.c.b16 %v455, %v453
        %v572 = vpack.c.b16 %v456, %v454
        %v573 = vpack.c.b16 %v459, %v457
        %v574 = vpack.c.b16 %v460, %v458
        %v575 = vpack.c.b16 %v463, %v461
        %v576 = vpack.c.b16 %v464, %v462
        %v577 = vpack.c.b16 %v467, %v465
        %v578 = vpack.c.b16 %v468, %v466
        %v579 = vpack.c.b16 %v471, %v469
        %v580 = vpack.c.b16 %v472, %v470
        %v581 = vpack.c.b16 %v475, %v473
        %v582 = vpack.c.b16 %v476, %v474
        %v583 = vpack.c.b16 %v479, %v477
        %v584 = vpack.c.b16 %v480, %v478
        %v585 = vpack.c.b16 %v483, %v481
        %v586 = vpack.c.b16 %v484, %v482
        %v587 = vpack.c.b16 %v487, %v485
        %v588 = vpack.c.b16 %v488, %v486
        %v589 = vpack.c.b16 %v491, %v489
        %v590 = vpack.c.b16 %v492, %v490
        %v591 = vpack.c.b16 %v495, %v493
        %v592 = vpack.c.b16 %v496, %v494
        %v593 = vpack.c.b16 %v499, %v497
        %v594 = vpack.c.b16 %v500, %v498
        %v595 = vpack.c.b16 %v503, %v501
        %v596 = vpack.c.b16 %v504, %v502
        %v597 = vpack.c.b16 %v507, %v505
        %v598 = vpack.c.b16 %v508, %v506
        %v599 = vpack.c.b16 %v511, %v509
        %v600 = vpack.c.b16 %v512, %v510
        %v601 = vpack.c.b16 %v515, %v513
        %v602 = vpack.c.b16 %v516, %v514
        %v603 = vpack.c.b16 %v519, %v517
        %v604 = vpack.c.b16 %v520, %v518
        %v605 = vpack.c.b16 %v523, %v521
        %v606 = vpack.c.b16 %v524, %v522
        %v607 = vpack.c.b16 %v527, %v525
        %v608 = vpack.c.b16 %v528, %v526
        %v609 = vpack.c.b16 %v531, %v529
        %v610 = vpack.c.b16 %v532, %v530
        %v611 = vpack.c.b16 %v535, %v533
        %v612 = vpack.c.b16 %v536, %v534
        %v613 = vpack.c.b16 %v539, %v537
        %v614 = vpack.c.b16 %v540, %v538
        %v615 = vpack.c.b16 %v543, %v541
        %v616 = vpack.c.b16 %v544, %v542
        %v617 = vpack.c.b16 %v547, %v545
        %v618 = vpack.c.b16 %v548, %v546
        %v619 = vpack.c.b16 %v551, %v549
        %v620 = vpack.c.b16 %v552, %v550
        %v621 = vpack.c.b16 %v555, %v553
        %v622 = vpack.c.b16 %v556, %v554
        %v623 = vpack.c.b16 %v559, %v557
        %v624 = vpack.c.b16 %v560, %v558
        %689 = vmatpush.bf16.msra.mxu0 %v575
        %690 = vmatpush.bf16.msra.mxu0 %v573
        %691 = vmatpush.bf16.msra.mxu0 %v571
        %692 = vmatpush.bf16.msra.mxu0 %v569
        %693 = vmatpush.bf16.msra.mxu0 %v567
        %694 = vmatpush.bf16.msra.mxu0 %v565
        %695 = vmatpush.bf16.msra.mxu0 %v563
        %696 = vmatpush.bf16.msra.mxu0 %v561
        %697 = vmatmul.bf16.gmra.mxu0 %v295
        %v698 = vpop.f32.mrf.mxu0
        %v699 = vadd.f32 %v365, %v698
        %v700 = vpop.f32.mrf.mxu0
        %701 = vdwg.mxu0
        %702 = vmatpush.bf16.msra.mxu0 %v591
        %703 = vmatpush.bf16.msra.mxu0 %v589
        %704 = vmatpush.bf16.msra.mxu0 %v587
        %705 = vmatpush.bf16.msra.mxu0 %v585
        %706 = vmatpush.bf16.msra.mxu0 %v583
        %707 = vmatpush.bf16.msra.mxu0 %v581
        %708 = vmatpush.bf16.msra.mxu0 %v579
        %709 = vmatpush.bf16.msra.mxu0 %v577
        %710 = vmatmul.bf16.gmra.mxu0 %v296
        %v711 = vpop.f32.mrf.mxu0
        %v712 = vadd.f32 %v699, %v711
        %v713 = vpop.f32.mrf.mxu0
        %714 = vdwg.mxu0
        %715 = vmatpush.bf16.msra.mxu0 %v607
        %716 = vmatpush.bf16.msra.mxu0 %v605
        %717 = vmatpush.bf16.msra.mxu0 %v603
        %718 = vmatpush.bf16.msra.mxu0 %v601
        %719 = vmatpush.bf16.msra.mxu0 %v599
        %720 = vmatpush.bf16.msra.mxu0 %v597
        %721 = vmatpush.bf16.msra.mxu0 %v595
        %722 = vmatpush.bf16.msra.mxu0 %v593
        %723 = vmatmul.bf16.gmra.mxu0 %v297
        %v724 = vpop.f32.mrf.mxu0
        %v725 = vadd.f32 %v712, %v724
        %v726 = vpop.f32.mrf.mxu0
        %727 = vdwg.mxu0
        %728 = vmatpush.bf16.msra.mxu0 %v623
        %729 = vmatpush.bf16.msra.mxu0 %v621
        %730 = vmatpush.bf16.msra.mxu0 %v619
        %731 = vmatpush.bf16.msra.mxu0 %v617
        %732 = vmatpush.bf16.msra.mxu0 %v615
        %733 = vmatpush.bf16.msra.mxu0 %v613
        %734 = vmatpush.bf16.msra.mxu0 %v611
        %735 = vmatpush.bf16.msra.mxu0 %v609
        %736 = vmatmul.bf16.gmra.mxu0 %v298
        %v737 = vpop.f32.mrf.mxu0
        %v738 = vadd.f32 %v725, %v737
        %v739 = vpop.f32.mrf.mxu0
        %740 = vdwg.mxu0
        %741 = vmatpush.bf16.msra.mxu0 %v576
        %742 = vmatpush.bf16.msra.mxu0 %v574
        %743 = vmatpush.bf16.msra.mxu0 %v572
        %744 = vmatpush.bf16.msra.mxu0 %v570
        %745 = vmatpush.bf16.msra.mxu0 %v568
        %746 = vmatpush.bf16.msra.mxu0 %v566
        %747 = vmatpush.bf16.msra.mxu0 %v564
        %748 = vmatpush.bf16.msra.mxu0 %v562
        %749 = vmatmul.bf16.gmra.mxu0 %v295
        %v750 = vpop.f32.mrf.mxu0
        %v751 = vadd.f32 %v366, %v750
        %v752 = vpop.f32.mrf.mxu0
        %753 = vdwg.mxu0
        %754 = vmatpush.bf16.msra.mxu0 %v592
        %755 = vmatpush.bf16.msra.mxu0 %v590
        %756 = vmatpush.bf16.msra.mxu0 %v588
        %757 = vmatpush.bf16.msra.mxu0 %v586
        %758 = vmatpush.bf16.msra.mxu0 %v584
        %759 = vmatpush.bf16.msra.mxu0 %v582
        %760 = vmatpush.bf16.msra.mxu0 %v580
        %761 = vmatpush.bf16.msra.mxu0 %v578
        %762 = vmatmul.bf16.gmra.mxu0 %v296
        %v763 = vpop.f32.mrf.mxu0
        %v764 = vadd.f32 %v751, %v763
        %v765 = vpop.f32.mrf.mxu0
        %766 = vdwg.mxu0
        %767 = vmatpush.bf16.msra.mxu0 %v608
        %768 = vmatpush.bf16.msra.mxu0 %v606
        %769 = vmatpush.bf16.msra.mxu0 %v604
        %770 = vmatpush.bf16.msra.mxu0 %v602
        %771 = vmatpush.bf16.msra.mxu0 %v600
        %772 = vmatpush.bf16.msra.mxu0 %v598
        %773 = vmatpush.bf16.msra.mxu0 %v596
        %774 = vmatpush.bf16.msra.mxu0 %v594
        %775 = vmatmul.bf16.gmra.mxu0 %v297
        %v776 = vpop.f32.mrf.mxu0
        %v777 = vadd.f32 %v764, %v776
        %v778 = vpop.f32.mrf.mxu0
        %779 = vdwg.mxu0
        %780 = vmatpush.bf16.msra.mxu0 %v624
        %781 = vmatpush.bf16.msra.mxu0 %v622
        %782 = vmatpush.bf16.msra.mxu0 %v620
        %783 = vmatpush.bf16.msra.mxu0 %v618
        %784 = vmatpush.bf16.msra.mxu0 %v616
        %785 = vmatpush.bf16.msra.mxu0 %v614
        %786 = vmatpush.bf16.msra.mxu0 %v612
        %787 = vmatpush.bf16.msra.mxu0 %v610
        %788 = vmatmul.bf16.gmra.mxu0 %v298
        %v789 = vpop.f32.mrf.mxu0
        %v790 = vadd.f32 %v777, %v789
        %v791 = vpop.f32.mrf.mxu0
        %792 = vdwg.mxu0
        %v793 = vmax.f32 %v738, 0.0
        %v794 = vmax.f32 %v790, 0.0
        %v795 = vpack.c.bf16 %v793, %v793
        %v796 = vpack.c.bf16 %v794, %v794
        %v797 = vld [vmem:[#allocation8] sm:$0xff]
        %v798 = vld [vmem:[#allocation8 + $0x8] sm:$0xff]
        %v799 = vld [vmem:[#allocation8 + $0x10] sm:$0xff]
        %v800 = vld [vmem:[#allocation8 + $0x18] sm:$0xff]
        %v801 = vld [vmem:[#allocation8 + $0x20] sm:$0xff]
        %v802 = vld [vmem:[#allocation8 + $0x28] sm:$0xff]
        %v803 = vld [vmem:[#allocation8 + $0x30] sm:$0xff]
        %v804 = vld [vmem:[#allocation8 + $0x38] sm:$0xff]
        %v805 = vld [vmem:[#allocation8 + $0x40] sm:$0xff]
        %v806 = vld [vmem:[#allocation8 + $0x48] sm:$0xff]
        %v807 = vld [vmem:[#allocation8 + $0x50] sm:$0xff]
        %v808 = vld [vmem:[#allocation8 + $0x58] sm:$0xff]
        %v809 = vld [vmem:[#allocation8 + $0x60] sm:$0xff]
        %v810 = vld [vmem:[#allocation8 + $0x68] sm:$0xff]
        %v811 = vld [vmem:[#allocation8 + $0x70] sm:$0xff]
        %v812 = vld [vmem:[#allocation8 + $0x78] sm:$0xff]
        %v813 = vld [vmem:[#allocation8 + $0x80] sm:$0xff]
        %v814 = vld [vmem:[#allocation8 + $0x88] sm:$0xff]
        %v815 = vld [vmem:[#allocation8 + $0x90] sm:$0xff]
        %v816 = vld [vmem:[#allocation8 + $0x98] sm:$0xff]
        %v817 = vld [vmem:[#allocation8 + $0xa0] sm:$0xff]
        %v818 = vld [vmem:[#allocation8 + $0xa8] sm:$0xff]
        %v819 = vld [vmem:[#allocation8 + $0xb0] sm:$0xff]
        %v820 = vld [vmem:[#allocation8 + $0xb8] sm:$0xff]
        %v821 = vld [vmem:[#allocation8 + $0xc0] sm:$0xff]
        %v822 = vld [vmem:[#allocation8 + $0xc8] sm:$0xff]
        %v823 = vld [vmem:[#allocation8 + $0xd0] sm:$0xff]
        %v824 = vld [vmem:[#allocation8 + $0xd8] sm:$0xff]
        %v825 = vld [vmem:[#allocation8 + $0xe0] sm:$0xff]
        %v826 = vld [vmem:[#allocation8 + $0xe8] sm:$0xff]
        %v827 = vld [vmem:[#allocation8 + $0xf0] sm:$0xff]
        %v828 = vld [vmem:[#allocation8 + $0xf8] sm:$0xff]
        %v829 = vld [vmem:[%s4] sm:$0x3]
        %v831 = vperm.slane %v829, 0
        %v832 = vperm.slane %v829, 1
        %v867 = vunpack.c.l.b16 %v797
        %v868 = vunpack.c.h.b16 %v797
        %v869 = vunpack.c.l.b16 %v798
        %v870 = vunpack.c.h.b16 %v798
        %v871 = vunpack.c.l.b16 %v799
        %v872 = vunpack.c.h.b16 %v799
        %v873 = vunpack.c.l.b16 %v800
        %v874 = vunpack.c.h.b16 %v800
        %v875 = vunpack.c.l.b16 %v801
        %v876 = vunpack.c.h.b16 %v801
        %v877 = vunpack.c.l.b16 %v802
        %v878 = vunpack.c.h.b16 %v802
        %v879 = vunpack.c.l.b16 %v803
        %v880 = vunpack.c.h.b16 %v803
        %v881 = vunpack.c.l.b16 %v804
        %v882 = vunpack.c.h.b16 %v804
        %v883 = vunpack.c.l.b16 %v805
        %v884 = vunpack.c.h.b16 %v805
        %v885 = vunpack.c.l.b16 %v806
        %v886 = vunpack.c.h.b16 %v806
        %v887 = vunpack.c.l.b16 %v807
        %v888 = vunpack.c.h.b16 %v807
        %v889 = vunpack.c.l.b16 %v808
        %v890 = vunpack.c.h.b16 %v808
        %v891 = vunpack.c.l.b16 %v809
        %v892 = vunpack.c.h.b16 %v809
        %v893 = vunpack.c.l.b16 %v810
        %v894 = vunpack.c.h.b16 %v810
        %v895 = vunpack.c.l.b16 %v811
        %v896 = vunpack.c.h.b16 %v811
        %v897 = vunpack.c.l.b16 %v812
        %v898 = vunpack.c.h.b16 %v812
        %v899 = vunpack.c.l.b16 %v813
        %v900 = vunpack.c.h.b16 %v813
        %v901 = vunpack.c.l.b16 %v814
        %v902 = vunpack.c.h.b16 %v814
        %v903 = vunpack.c.l.b16 %v815
        %v904 = vunpack.c.h.b16 %v815
        %v905 = vunpack.c.l.b16 %v816
        %v906 = vunpack.c.h.b16 %v816
        %v907 = vunpack.c.l.b16 %v817
        %v908 = vunpack.c.h.b16 %v817
        %v909 = vunpack.c.l.b16 %v818
        %v910 = vunpack.c.h.b16 %v818
        %v911 = vunpack.c.l.b16 %v819
        %v912 = vunpack.c.h.b16 %v819
        %v913 = vunpack.c.l.b16 %v820
        %v914 = vunpack.c.h.b16 %v820
        %v915 = vunpack.c.l.b16 %v821
        %v916 = vunpack.c.h.b16 %v821
        %v917 = vunpack.c.l.b16 %v822
        %v918 = vunpack.c.h.b16 %v822
        %v919 = vunpack.c.l.b16 %v823
        %v920 = vunpack.c.h.b16 %v823
        %v921 = vunpack.c.l.b16 %v824
        %v922 = vunpack.c.h.b16 %v824
        %v923 = vunpack.c.l.b16 %v825
        %v924 = vunpack.c.h.b16 %v825
        %v925 = vunpack.c.l.b16 %v826
        %v926 = vunpack.c.h.b16 %v826
        %v927 = vunpack.c.l.b16 %v827
        %v928 = vunpack.c.h.b16 %v827
        %v929 = vunpack.c.l.b16 %v828
        %v930 = vunpack.c.h.b16 %v828
        %v931 = vpack.c.b16 %v869, %v867
        %v932 = vpack.c.b16 %v870, %v868
        %v933 = vpack.c.b16 %v873, %v871
        %v934 = vpack.c.b16 %v874, %v872
        %v935 = vpack.c.b16 %v877, %v875
        %v936 = vpack.c.b16 %v878, %v876
        %v937 = vpack.c.b16 %v881, %v879
        %v938 = vpack.c.b16 %v882, %v880
        %v939 = vpack.c.b16 %v885, %v883
        %v940 = vpack.c.b16 %v886, %v884
        %v941 = vpack.c.b16 %v889, %v887
        %v942 = vpack.c.b16 %v890, %v888
        %v943 = vpack.c.b16 %v893, %v891
        %v944 = vpack.c.b16 %v894, %v892
        %v945 = vpack.c.b16 %v897, %v895
        %v946 = vpack.c.b16 %v898, %v896
        %v947 = vpack.c.b16 %v901, %v899
        %v948 = vpack.c.b16 %v902, %v900
        %v949 = vpack.c.b16 %v905, %v903
        %v950 = vpack.c.b16 %v906, %v904
        %v951 = vpack.c.b16 %v909, %v907
        %v952 = vpack.c.b16 %v910, %v908
        %v953 = vpack.c.b16 %v913, %v911
        %v954 = vpack.c.b16 %v914, %v912
        %v955 = vpack.c.b16 %v917, %v915
        %v956 = vpack.c.b16 %v918, %v916
        %v957 = vpack.c.b16 %v921, %v919
        %v958 = vpack.c.b16 %v922, %v920
        %v959 = vpack.c.b16 %v925, %v923
        %v960 = vpack.c.b16 %v926, %v924
        %v961 = vpack.c.b16 %v929, %v927
        %v962 = vpack.c.b16 %v930, %v928
        %995 = vmatpush.bf16.msra.mxu0 %v945
        %996 = vmatpush.bf16.msra.mxu0 %v943
        %997 = vmatpush.bf16.msra.mxu0 %v941
        %998 = vmatpush.bf16.msra.mxu0 %v939
        %999 = vmatpush.bf16.msra.mxu0 %v937
        %1000 = vmatpush.bf16.msra.mxu0 %v935
        %1001 = vmatpush.bf16.msra.mxu0 %v933
        %1002 = vmatpush.bf16.msra.mxu0 %v931
        %1003 = vmatmul.bf16.gmra.mxu0 %v795
        %v1004 = vpop.f32.mrf.mxu0
        %v1005 = vadd.f32 %v831, %v1004
        %v1006 = vpop.f32.mrf.mxu0
        %1007 = vdwg.mxu0
        %1008 = vmatpush.bf16.msra.mxu0 %v961
        %1009 = vmatpush.bf16.msra.mxu0 %v959
        %1010 = vmatpush.bf16.msra.mxu0 %v957
        %1011 = vmatpush.bf16.msra.mxu0 %v955
        %1012 = vmatpush.bf16.msra.mxu0 %v953
        %1013 = vmatpush.bf16.msra.mxu0 %v951
        %1014 = vmatpush.bf16.msra.mxu0 %v949
        %1015 = vmatpush.bf16.msra.mxu0 %v947
        %1016 = vmatmul.bf16.gmra.mxu0 %v796
        %v1017 = vpop.f32.mrf.mxu0
        %v1018 = vadd.f32 %v1005, %v1017
        %v1019 = vpop.f32.mrf.mxu0
        %1020 = vdwg.mxu0
        %1021 = vmatpush.bf16.msra.mxu0 %v946
        %1022 = vmatpush.bf16.msra.mxu0 %v944
        %1023 = vmatpush.bf16.msra.mxu0 %v942
        %1024 = vmatpush.bf16.msra.mxu0 %v940
        %1025 = vmatpush.bf16.msra.mxu0 %v938
        %1026 = vmatpush.bf16.msra.mxu0 %v936
        %1027 = vmatpush.bf16.msra.mxu0 %v934
        %1028 = vmatpush.bf16.msra.mxu0 %v932
        %1029 = vmatmul.bf16.gmra.mxu0 %v795
        %v1030 = vpop.f32.mrf.mxu0
        %v1031 = vadd.f32 %v832, %v1030
        %v1032 = vpop.f32.mrf.mxu0
        %1033 = vdwg.mxu0
        %1034 = vmatpush.bf16.msra.mxu0 %v962
        %1035 = vmatpush.bf16.msra.mxu0 %v960
        %1036 = vmatpush.bf16.msra.mxu0 %v958
        %1037 = vmatpush.bf16.msra.mxu0 %v956
        %1038 = vmatpush.bf16.msra.mxu0 %v954
        %1039 = vmatpush.bf16.msra.mxu0 %v952
        %1040 = vmatpush.bf16.msra.mxu0 %v950
        %1041 = vmatpush.bf16.msra.mxu0 %v948
        %1042 = vmatmul.bf16.gmra.mxu0 %v796
        %v1043 = vpop.f32.mrf.mxu0
        %v1044 = vadd.f32 %v1031, %v1043
        %v1045 = vpop.f32.mrf.mxu0
        %1046 = vdwg.mxu0
        %v1047 = vxor.u32 %v1018, 2147483648
        %v1048 = vxor.u32 %v1044, 2147483648
        %v1049 = vmul.f32 %v1047, 1.442695
        %v1050 = vpow.pop %v1049
        %v1051 = vmul.f32 %v1048, 1.442695
        %v1052 = vpow.pop %v1051
        %v1053 = vadd.f32 %v1050, 1.0
        %v1054 = vadd.f32 %v1052, 1.0
        %v1055 = vrcp.pop %v1053
        %v1056 = vmul.f32 %v1053, %v1055
        %v1057 = vsub.f32 1.0, %v1056
        %v1058 = vmul.f32 %v1055, %v1057
        %v1059 = vadd.f32 %v1055, %v1058
        %vm1060 = vweird.f32 %v1053
        %vm1061 = vweird.f32 %v1055
        %vm1062 = vmor %vm1060, %vm1061
        %v1063 = vsel %vm1062, %v1055, %v1059
        %v1064 = vand.u32 2147483647, %v1053
        %vm1065 = vcmp.eq.f32.partialorder %v1064, 8.507059e+37
        %v1066 = vand.u32 %v1053, 2147483648
        %v1067 = vor.u32 1.1754944e-38, %v1066
        %v1068 = vsel %vm1065, %v1067, %v1063
        %v1069 = vmul.f32 1.0, %v1068
        %v1070 = vrcp.pop %v1054
        %v1071 = vmul.f32 %v1054, %v1070
        %v1072 = vsub.f32 1.0, %v1071
        %v1073 = vmul.f32 %v1070, %v1072
        %v1074 = vadd.f32 %v1070, %v1073
        %vm1075 = vweird.f32 %v1054
        %vm1076 = vweird.f32 %v1070
        %vm1077 = vmor %vm1075, %vm1076
        %v1078 = vsel %vm1077, %v1070, %v1074
        %v1079 = vand.u32 2147483647, %v1054
        %vm1080 = vcmp.eq.f32.partialorder %v1079, 8.507059e+37
        %v1081 = vand.u32 %v1054, 2147483648
        %v1082 = vor.u32 1.1754944e-38, %v1081
        %v1083 = vsel %vm1080, %v1082, %v1078
        %v1084 = vmul.f32 1.0, %v1083
        %v1085 = vpack.c.bf16 %v1084, %v1069
        %1086 = vst [vmem:[%s290] sm:$0xff] %v1085
        %s1087 = sand.u32 %s142, 1
        %s1088 = scalar_lea.sflag [#allocation4], %s1087
        %s1089 = sand.u32 %s142, 1
        %s1090 = smul.addr %s1089, 8
        %s1091 = scalar_lea.vmem [#allocation10], %s1090
        // Predicated region
        $region57: #{tpu_custom_call.1} parent=39 // pred_check
          %p1092 = pneg %p152
        $region58: #{tpu_custom_call.1} parent=39 // pred_check_branch
          %1094 = sbr.rel (%p1092) target = $region60
        $region59: #{tpu_custom_call.1} parent=39 // pred_region
          %1096 = vsyncadd %s1088, 0
          %s1097 = smul.addr %s24, 2
          %s1098 = smul.addr %s1097, 4
          %s1099 = scalar_lea.hbm %s5, %s1098
          %s1101 = sshll.u32 %s1091, 4
          %s1102 = int_to_ptr.vmem [resolvable:$true] %s1101
          %s1103 = sshll.u32 %s1099, 4
          %s1104 = int_to_ptr.hbm [resolvable:$true] %s1103
          %1106 = dma.vmem_to_hbm [thread:$0]  %s1102, 128, %s1104, %s1088
        $region60: #{tpu_custom_call.1} parent=39 // pred_fallthru
          _
      $region40: #{tpu_custom_call.1} parent=5 // pred_fallthru
        _
      %p1107 = scmp.le.s32.totalorder 2, %s19
      // Predicated region
      $region61: #{tpu_custom_call.1} parent=5 // pred_check
        %p1108 = pneg %p1107
      $region62: #{tpu_custom_call.1} parent=5 // pred_check_branch
        %1110 = sbr.rel (%p1108) target = $region64
      $region63: #{tpu_custom_call.1} parent=5 // pred_region
        %s1111 = ssub.s32 %s19, 2
        // Predicated region
        $region65: #{tpu_custom_call.1} parent=63 // pred_check
          %p1112 = pneg %p158
        $region66: #{tpu_custom_call.1} parent=63 // pred_check_branch
          %1114 = sbr.rel (%p1112) target = $region68
        $region67: #{tpu_custom_call.1} parent=63 // pred_region
          %s1115 = sand.u32 %s143, 1
          %s1116 = scalar_lea.sflag [#allocation4], %s1115
          %s1117 = sand.u32 %s143, 1
          %s1118 = smul.addr %s1117, 8
          %s1119 = scalar_lea.vmem [#allocation10], %s1118
          %1121 = dma.done %s1116, 128
        $region68: #{tpu_custom_call.1} parent=63 // pred_fallthru
          _
      $region64: #{tpu_custom_call.1} parent=5 // pred_fallthru
        _
    $region6: #{tpu_custom_call.1} parent=1 // loop_footer
      %s23 = sadd.s32 1, %s19
    $region7: #{tpu_custom_call.1} parent=1 // loop_footer_branch
      %18 = sbr.rel target = $region3
    $region8: #{tpu_custom_call.1} parent=1 // loop_exit
      _
    %1122 = vsyncpa [#allocation3], 1
    %s1123 = scalar_lea.sflag [#allocation3], 1
    %1124 = vsyncpa %s1123, 1
    %1125 = vsyncpa [#allocation6], 1
    %1126 = vsyncpa [#allocation9], 1
    %1127 = vsyncpa [#allocation4], 1
    %s1128 = scalar_lea.sflag [#allocation4], 1
    %1129 = vsyncpa %s1128, 1

</llo_original>
